<compile_context>
chip_gen: v7x
topology: tpu7x:2x2x1
jax: 0.10.0
libtpu: 0.0.40
codegen_flags: <defaults>
</compile_context>

<pallas_src>
import functools

import jax
import jax.numpy as jnp
from jax.experimental import pallas as pl
from jax.experimental.pallas import tpu as pltpu


_VMEM_LIMIT = 32 * 1024 * 1024       # bytes; safe on v5e/v6e/v7x
_FUSED_MAX_SLAB = 4 * 1024 * 1024    # max C*H*W bytes for the fused path
_FUSED_BLOCK_TARGET = 2 * 1024 * 1024
_APPLY_BLOCK_TARGET = 4 * 1024 * 1024
_POOL_BLOCK_TARGET = 2 * 1024 * 1024


def _largest_divisor_tile(n, quantum, max_tile):
    """Largest divisor of `n` that is a multiple of `quantum` and <= max_tile (or None)."""
    best = None
    c = quantum
    limit = min(n, max_tile)
    while c <= limit:
        if n % c == 0:
            best = c
        c += quantum
    return best


def _gate_mlp(pooled_f32, w1t, w2t):
    """pooled_f32: (rows, C).  w1t: (C, hidden), w2t: (hidden, C) (pre-transposed)."""
    h = jnp.dot(pooled_f32, w1t.astype(jnp.float32), preferred_element_type=jnp.float32)
    h = h * jax.nn.sigmoid(h)                                   # SiLU
    g = jnp.dot(h, w2t.astype(jnp.float32), preferred_element_type=jnp.float32)
    return jax.nn.sigmoid(g)                                    # (rows, C) f32


# ---------------------------------------------------------------------------
# Fused single pass: pool + gate MLP + residual add, one batch block per step.
# ---------------------------------------------------------------------------
def _fused_kernel(x_ref, w1t_ref, w2t_ref, o_ref, *, inv_hw):
    xt = x_ref[...]                                             # (tb, C, N) native dtype
    pooled = jnp.sum(xt.astype(jnp.float32), axis=-1) * inv_hw  # (tb, C) f32 mean
    gate = _gate_mlp(pooled, w1t_ref[...], w2t_ref[...])        # (tb, C) f32
    o_ref[...] = xt + gate[:, :, None].astype(o_ref.dtype)      # add in native dtype


# ---------------------------------------------------------------------------
# Fallback pass 1: spatial-tiled global average pool + excitation MLP -> gate.
# ---------------------------------------------------------------------------
def _pool_gate_kernel(x_ref, w1t_ref, w2t_ref, gate_ref, acc_ref, *, inv_hw, n_true, tn):
    j = pl.program_id(1)

    @pl.when(j == 0)
    def _init():
        acc_ref[...] = jnp.zeros_like(acc_ref)

    xt = x_ref[...].astype(jnp.float32)                         # (tb, C, tn)
    if n_true % tn != 0:
        # Ragged last spatial block: zero the out-of-bounds lanes before summing.
        lane = j * tn + jax.lax.broadcasted_iota(jnp.int32, xt.shape, 2)
        xt = jnp.where(lane < n_true, xt, 0.0)
    acc_ref[...] += jnp.sum(xt, axis=-1)                        # (tb, C) f32 partial sum

    @pl.when(j == pl.num_programs(1) - 1)
    def _finalize():
        pooled = acc_ref[...] * inv_hw
        gate_ref[...] = _gate_mlp(pooled, w1t_ref[...], w2t_ref[...])


# ---------------------------------------------------------------------------
# Fallback pass 2: stream x tiles, broadcast the per-(b,c) gate, residual add.
# ---------------------------------------------------------------------------
def _apply_gate_kernel(x_ref, gate_ref, o_ref):
    # gate_ref is (tm, 1) f32; cast once, broadcast over the lane axis.
    o_ref[...] = x_ref[...] + gate_ref[...].astype(o_ref.dtype)


def squeeze_excitation(x, w1, w2, *, force_two_pass=False):
    """x: (B, C, H, W) NCHW.
    w1: (hidden, C)  == nn.Linear(dim, hidden, bias=False).weight
    w2: (C, hidden)  == nn.Linear(hidden, dim, bias=False).weight
    """
    B, C, H, W = x.shape
    hidden = w1.shape[0]
    N = H * W
    M = B * C
    itemsize = jnp.dtype(x.dtype).itemsize
    inv_hw = 1.0 / float(N)

    # Wrapper-side glue (layout only): pre-transpose weights, flatten spatial
    # dims so the lane axis is H*W (lane-dense loads/stores, no padding).
    w1t = jnp.transpose(w1)            # (C, hidden)
    w2t = jnp.transpose(w2)            # (hidden, C)
    x3 = x.reshape(B, C, N)

    slab_bytes = C * N * itemsize      # one batch's x slab

    # ------------------------------------------------------------------ fused
    if slab_bytes <= _FUSED_MAX_SLAB and not force_two_pass:
        tb = _largest_divisor_tile(
            B, 1, max(1, _FUSED_BLOCK_TARGET // max(1, slab_bytes))) or 1
        cost = pl.CostEstimate(
            flops=2 * B * C * N + 4 * B * C * hidden,
            transcendentals=B * (hidden + C),
            bytes_accessed=2 * B * C * N * itemsize)
        out3 = pl.pallas_call(
            functools.partial(_fused_kernel, inv_hw=inv_hw),
            out_shape=jax.ShapeDtypeStruct((B, C, N), x.dtype),
            grid=(B // tb,),
            in_specs=[
                pl.BlockSpec((tb, C, N), lambda i: (i, 0, 0)),
                pl.BlockSpec((C, hidden), lambda i: (0, 0)),   # VMEM-resident weights
                pl.BlockSpec((hidden, C), lambda i: (0, 0)),
            ],
            out_specs=pl.BlockSpec((tb, C, N), lambda i: (i, 0, 0)),
            compiler_params=pltpu.CompilerParams(
                dimension_semantics=("parallel",),             # megacore on v7x
                vmem_limit_bytes=_VMEM_LIMIT),
            cost_estimate=cost,
        )(x3, w1t, w2t)
        return out3.reshape(B, C, H, W)

    # --------------------------------------------------------------- fallback
    # Pass 1: pooled stats + gate MLP (batch blocks parallel, spatial reduction).
    tn_cap = max(128, min(1024, _POOL_BLOCK_TARGET // max(1, C * itemsize)))
    tn_cap = max(128, (tn_cap // 128) * 128)
    tn_pool = _largest_divisor_tile(N, 128, tn_cap)
    if tn_pool is None:
        if N <= tn_cap:
            tn_pool = N                # full-extent spatial block, no masking
        else:
            tn_pool = tn_cap           # ragged last block, masked in-kernel
    grid_j = pl.cdiv(N, tn_pool)
    tb1 = _largest_divisor_tile(
        B, 1, max(1, _POOL_BLOCK_TARGET // max(1, C * tn_pool * itemsize))) or 1

    # TODO(synk): if xprof shows exposed DMA on the x stream, sweep
    # pipeline_mode=pl.Buffered(3) on in_specs[0] (keep 2 if VMEM-tight on v7x).
    gate = pl.pallas_call(
        functools.partial(_pool_gate_kernel, inv_hw=inv_hw, n_true=N, tn=tn_pool),
        out_shape=jax.ShapeDtypeStruct((B, C), jnp.float32),
        grid=(B // tb1, grid_j),
        in_specs=[
            pl.BlockSpec((tb1, C, tn_pool), lambda i, j: (i, 0, j)),
            pl.BlockSpec((C, hidden), lambda i, j: (0, 0)),
            pl.BlockSpec((hidden, C), lambda i, j: (0, 0)),
        ],
        out_specs=pl.BlockSpec((tb1, C), lambda i, j: (i, 0)),
        scratch_shapes=[pltpu.VMEM((tb1, C), jnp.float32)],
        compiler_params=pltpu.CompilerParams(
            dimension_semantics=("parallel", "arbitrary"),
            vmem_limit_bytes=_VMEM_LIMIT),
        cost_estimate=pl.CostEstimate(
            flops=B * C * N + 4 * B * C * hidden,
            transcendentals=B * (hidden + C),
            bytes_accessed=B * C * N * itemsize),
    )(x3, w1t, w2t)

    # Pass 2: lane-dense streaming residual add with large blocks.
    x2 = x.reshape(M, N)
    gate2 = gate.reshape(M, 1)
    tn = _largest_divisor_tile(N, 128, 2048)
    if tn is None:
        tn = N                         # full-extent lane block (exempt from 128 rule)
    tm_cap = min(512, max(8, _APPLY_BLOCK_TARGET // max(1, tn * itemsize)))
    tm = _largest_divisor_tile(M, 8, tm_cap)
    if tm is None:
        tm = M                         # full-extent row block

    out2 = pl.pallas_call(
        _apply_gate_kernel,
        out_shape=jax.ShapeDtypeStruct((M, N), x.dtype),
        grid=(M // tm, N // tn),
        in_specs=[
            pl.BlockSpec((tm, tn), lambda i, j: (i, j)),
            pl.BlockSpec((tm, 1), lambda i, j: (i, 0)),
        ],
        out_specs=pl.BlockSpec((tm, tn), lambda i, j: (i, j)),
        compiler_params=pltpu.CompilerParams(
            dimension_semantics=("parallel", "parallel"),
            vmem_limit_bytes=_VMEM_LIMIT),
        cost_estimate=pl.CostEstimate(
            flops=M * N, transcendentals=0,
            bytes_accessed=2 * M * N * itemsize),
    )(x2, gate2)

    return out2.reshape(B, C, H, W)


def _reference(x, w1, w2):
    pooled = jnp.mean(x.astype(jnp.float32), axis=(2, 3))
    h = pooled @ jnp.transpose(w1).astype(jnp.float32)
    h = h * jax.nn.sigmoid(h)
    g = jax.nn.sigmoid(h @ jnp.transpose(w2).astype(jnp.float32))
    return x + g.astype(x.dtype)[:, :, None, None]


if __name__ == "__main__":
    key = jax.random.PRNGKey(0)
    kx, k1, k2 = jax.random.split(key, 3)

    B, C, H, W = 2, 16, 32, 32
    shrinkage_rate = 0.25
    hidden = int(C * shrinkage_rate)   # = 4, matches int(dim * shrinkage_rate)

    x = jax.random.normal(kx, (B, C, H, W), dtype=jnp.float32)
    # Deterministic synthetic parameters (nn.Linear weight shapes, no bias).
    w1 = jax.random.normal(k1, (hidden, C), dtype=jnp.float32) * 0.1
    w2 = jax.random.normal(k2, (C, hidden), dtype=jnp.float32) * 0.1

    ref = _reference(x, w1, w2)

    # 1) Fused single-pass path (the common case).
    out = jax.block_until_ready(squeeze_excitation(x, w1, w2))
    assert out.shape == (B, C, H, W)
    assert jnp.allclose(out, ref, atol=1e-5, rtol=1e-5)

    # 2) Two-pass fallback path, forced (divisible spatial size).
    out_fb = jax.block_until_ready(squeeze_excitation(x, w1, w2, force_two_pass=True))
    assert jnp.allclose(out_fb, ref, atol=1e-5, rtol=1e-5)

    # 3) Two-pass fallback with a non-128-divisible spatial size (exercises the
    #    cdiv grid + in-kernel lane masking, no HBM padding copy).
    Hr = Wr = 37                      # N = 1369, no multiple-of-128 divisor
    xr = jax.random.normal(kx, (B, C, Hr, Wr), dtype=jnp.float32)
    out_r = jax.block_until_ready(squeeze_excitation(xr, w1, w2, force_two_pass=True))
    assert jnp.allclose(out_r, _reference(xr, w1, w2), atol=1e-5, rtol=1e-5)

    print("KERNEL_OK")
</pallas_src>

<mosaic_0001>
module attributes {stable_mosaic.version = 11 : i64} {
  func.func @_fused_kernel(%arg0: i32, %arg1: memref<2x16x1024xf32, #tpu.memory_space<vmem>>, %arg2: memref<16x4xf32, #tpu.memory_space<vmem>>, %arg3: memref<4x16xf32, #tpu.memory_space<vmem>>, %arg4: memref<2x16x1024xf32, #tpu.memory_space<vmem>>) attributes {dimension_semantics = [#tpu.dimension_semantics<parallel>], iteration_bounds = array<i64: 1>, scalar_prefetch = 0 : i64, scratch_operands = 0 : i64, tpu.core_type = #tpu.core_type<tc>, window_params = [{transform_indices = @transform_0, window_bounds = array<i64: 2, 16, 1024>}, {pipeline_mode = #tpu.pipeline_mode<synchronous>, transform_indices = @transform_1, window_bounds = array<i64: 16, 4>}, {pipeline_mode = #tpu.pipeline_mode<synchronous>, transform_indices = @transform_2, window_bounds = array<i64: 4, 16>}, {transform_indices = @transform_3, window_bounds = array<i64: 2, 16, 1024>}]} {
    %c0 = arith.constant 0 : index
    %c0_0 = arith.constant 0 : index
    %c0_1 = arith.constant 0 : index
    %0 = vector.load %arg1[%c0, %c0_0, %c0_1] : memref<2x16x1024xf32, #tpu.memory_space<vmem>>, vector<2x16x1024xf32>
    %cst = arith.constant dense<0.000000e+00> : vector<2x16xf32>
    %1 = vector.multi_reduction <add>, %0, %cst [2] : vector<2x16x1024xf32> to vector<2x16xf32>
    %cst_2 = arith.constant 9.765625E-4 : f32
    %2 = vector.broadcast %cst_2 : f32 to vector<2x16xf32>
    %3 = arith.mulf %1, %2 : vector<2x16xf32>
    %c0_3 = arith.constant 0 : index
    %c0_4 = arith.constant 0 : index
    %4 = vector.load %arg2[%c0_3, %c0_4] : memref<16x4xf32, #tpu.memory_space<vmem>>, vector<16x4xf32>
    %c0_5 = arith.constant 0 : index
    %c0_6 = arith.constant 0 : index
    %5 = vector.load %arg3[%c0_5, %c0_6] : memref<4x16xf32, #tpu.memory_space<vmem>>, vector<4x16xf32>
    %cst_7 = arith.constant dense<0.000000e+00> : vector<2x4xf32>
    %6 = tpu.matmul %3, %4, %cst_7 {dimension_numbers = #tpu.dot_dimension_numbers<[1], [0], [0], [1], [0, 0, 1, 1], [], []>} : vector<2x16xf32>, vector<16x4xf32>, vector<2x4xf32> -> vector<2x4xf32>
    %7 = arith.negf %6 : vector<2x4xf32>
    %8 = math.exp %7 : vector<2x4xf32>
    %cst_8 = arith.constant 1.000000e+00 : f32
    %9 = vector.broadcast %cst_8 : f32 to vector<2x4xf32>
    %10 = arith.addf %9, %8 : vector<2x4xf32>
    %11 = arith.divf %9, %10 : vector<2x4xf32>
    %12 = arith.mulf %6, %11 : vector<2x4xf32>
    %cst_9 = arith.constant dense<0.000000e+00> : vector<2x16xf32>
    %13 = tpu.matmul %12, %5, %cst_9 {dimension_numbers = #tpu.dot_dimension_numbers<[1], [0], [0], [1], [0, 0, 1, 1], [], []>} : vector<2x4xf32>, vector<4x16xf32>, vector<2x16xf32> -> vector<2x16xf32>
    %14 = arith.negf %13 : vector<2x16xf32>
    %15 = math.exp %14 : vector<2x16xf32>
    %cst_10 = arith.constant 1.000000e+00 : f32
    %16 = vector.broadcast %cst_10 : f32 to vector<2x16xf32>
    %17 = arith.addf %16, %15 : vector<2x16xf32>
    %18 = arith.divf %16, %17 : vector<2x16xf32>
    %19 = vector.shape_cast %18 : vector<2x16xf32> to vector<2x16x1xf32>
    %20 = vector.broadcast %19 : vector<2x16x1xf32> to vector<2x16x1024xf32>
    %21 = arith.addf %0, %20 : vector<2x16x1024xf32>
    %c0_11 = arith.constant 0 : index
    %c0_12 = arith.constant 0 : index
    %c0_13 = arith.constant 0 : index
    %22 = vector.load %arg4[%c0_11, %c0_12, %c0_13] : memref<2x16x1024xf32, #tpu.memory_space<vmem>>, vector<2x16x1024xf32>
    tpu.vector_store %arg4[%c0_11, %c0_12, %c0_13], %21 {strides = array<i32>} : memref<2x16x1024xf32, #tpu.memory_space<vmem>>, vector<2x16x1024xf32>,
    return
  }
  func.func @transform_0(%arg0: i32) -> (i32, i32, i32) {
    %c0_i32 = arith.constant 0 : i32
    %c0_i32_0 = arith.constant 0 : i32
    %c0_i32_1 = arith.constant 0 : i32
    return %arg0, %c0_i32, %c0_i32_0 : i32, i32, i32
  }
  func.func @transform_1(%arg0: i32) -> (i32, i32) {
    %c0_i32 = arith.constant 0 : i32
    %c0_i32_0 = arith.constant 0 : i32
    %c0_i32_1 = arith.constant 0 : i32
    return %c0_i32, %c0_i32_0 : i32, i32
  }
  func.func @transform_2(%arg0: i32) -> (i32, i32) {
    %c0_i32 = arith.constant 0 : i32
    %c0_i32_0 = arith.constant 0 : i32
    %c0_i32_1 = arith.constant 0 : i32
    return %c0_i32, %c0_i32_0 : i32, i32
  }
  func.func @transform_3(%arg0: i32) -> (i32, i32, i32) {
    %c0_i32 = arith.constant 0 : i32
    %c0_i32_0 = arith.constant 0 : i32
    %c0_i32_1 = arith.constant 0 : i32
    return %arg0, %c0_i32, %c0_i32_0 : i32, i32, i32
  }
}

</mosaic_0001>

<llo_original>
// kernel: tpu_custom_call.1
$region0: #{tpu_custom_call.1}
  #allocation0 [shape = 'u32[]', space=smem, size = 0x4, offset = 0x4, fixed_abs, tag = 'smem constant byte address 0x4 - core index']
  #allocation1 [shape = 'u32[144,128]{1,0:T(1,128)}', space=vmem, size = 0x12000, scoped, tag = 'internal scratch']
  %s0 = inlined_call_operand.hbm [shape: f32[2,16,1024], index: 0, kind: input, shape index: {}]
  %s1 = inlined_call_operand.vmem [shape: f32[16,4], index: 1, kind: input, shape index: {}]
  %s2 = inlined_call_operand.vmem [shape: f32[4,16], index: 2, kind: input, shape index: {}]
  %s3 = inlined_call_operand.hbm [shape: f32[2,16,1024], index: 3, kind: output, shape index: {}]
  %s4 = sld [smem:[#allocation0]]
  $region26: #{tpu_custom_call.1} parent=0
    _
  %s6 = ssub.s32 1, %s4
  %s7 = scalar_select 0, %s6, %s4
  $region1: #{tpu_custom_call.1} parent=0
    #allocation2 [shape = 'u8[131072]{0}', space=vmem, size = 0x20000, scoped, tag = 'input window, operand 0, single buffered']
    #allocation3 [shape = 's32[1]{0}', space=sflag, size = 0x4, scoped, tag = 'scoped memory for tpu_custom_call.1']
    #allocation4 [shape = 's32[1]{0}', space=sflag, size = 0x4, scoped, tag = 'scoped memory for tpu_custom_call.1']
    #allocation5 [shape = 'u8[131072]{0}', space=vmem, size = 0x20000, scoped, tag = 'output window, operand 0, single buffered']
    %8 = vsyncpa [#allocation3], 0
    %9 = vsyncpa [#allocation4], 0
    // Predicated region
    $region2: #{tpu_custom_call.1} parent=1 // pred_check
      _
    $region3: #{tpu_custom_call.1} parent=1 // pred_check_branch
      %11 = sbr.rel (0) target = $region5
    $region4: #{tpu_custom_call.1} parent=1 // pred_region
      %s13 = ssub.s32 4096, 4096
      %14 = vsyncadd [#allocation3], %s13
      %s15 = sshll.u32 [#allocation2], 4
      %s16 = int_to_ptr.vmem [resolvable:$true] %s15
      %21 = dma.hbm_to_vmem [thread:$0]  %s0, 4096, %s16, [#allocation3], 1024, 1024, 64
    $region5: #{tpu_custom_call.1} parent=1 // pred_fallthru
      _
    // Predicated region
    $region6: #{tpu_custom_call.1} parent=1 // pred_check
      _
    $region7: #{tpu_custom_call.1} parent=1 // pred_check_branch
      %23 = sbr.rel (0) target = $region9
    $region8: #{tpu_custom_call.1} parent=1 // pred_region
      _
    $region9: #{tpu_custom_call.1} parent=1 // pred_fallthru
      _
    // Predicated region
    $region10: #{tpu_custom_call.1} parent=1 // pred_check
      _
    $region11: #{tpu_custom_call.1} parent=1 // pred_check_branch
      %25 = sbr.rel (0) target = $region13
    $region12: #{tpu_custom_call.1} parent=1 // pred_region
      _
    $region13: #{tpu_custom_call.1} parent=1 // pred_fallthru
      _
    // Predicated region
    $region14: #{tpu_custom_call.1} parent=1 // pred_check
      _
    $region15: #{tpu_custom_call.1} parent=1 // pred_check_branch
      %27 = sbr.rel (0) target = $region17
    $region16: #{tpu_custom_call.1} parent=1 // pred_region
      %28 = dma.done [#allocation3], 4096
    $region17: #{tpu_custom_call.1} parent=1 // pred_fallthru
      _
    %v29 = vld [vmem:[#allocation2] sm:$0xff]
    %v30 = vld [vmem:[#allocation2 + $0x8] sm:$0xff]
    %v31 = vld [vmem:[#allocation2 + $0x10] sm:$0xff]
    %v32 = vld [vmem:[#allocation2 + $0x18] sm:$0xff]
    %v33 = vld [vmem:[#allocation2 + $0x20] sm:$0xff]
    %v34 = vld [vmem:[#allocation2 + $0x28] sm:$0xff]
    %v35 = vld [vmem:[#allocation2 + $0x30] sm:$0xff]
    %v36 = vld [vmem:[#allocation2 + $0x38] sm:$0xff]
    %v37 = vld [vmem:[#allocation2 + $0x40] sm:$0xff]
    %v38 = vld [vmem:[#allocation2 + $0x48] sm:$0xff]
    %v39 = vld [vmem:[#allocation2 + $0x50] sm:$0xff]
    %v40 = vld [vmem:[#allocation2 + $0x58] sm:$0xff]
    %v41 = vld [vmem:[#allocation2 + $0x60] sm:$0xff]
    %v42 = vld [vmem:[#allocation2 + $0x68] sm:$0xff]
    %v43 = vld [vmem:[#allocation2 + $0x70] sm:$0xff]
    %v44 = vld [vmem:[#allocation2 + $0x78] sm:$0xff]
    %v45 = vld [vmem:[#allocation2 + $0x80] sm:$0xff]
    %v46 = vld [vmem:[#allocation2 + $0x88] sm:$0xff]
    %v47 = vld [vmem:[#allocation2 + $0x90] sm:$0xff]
    %v48 = vld [vmem:[#allocation2 + $0x98] sm:$0xff]
    %v49 = vld [vmem:[#allocation2 + $0xa0] sm:$0xff]
    %v50 = vld [vmem:[#allocation2 + $0xa8] sm:$0xff]
    %v51 = vld [vmem:[#allocation2 + $0xb0] sm:$0xff]
    %v52 = vld [vmem:[#allocation2 + $0xb8] sm:$0xff]
    %v53 = vld [vmem:[#allocation2 + $0xc0] sm:$0xff]
    %v54 = vld [vmem:[#allocation2 + $0xc8] sm:$0xff]
    %v55 = vld [vmem:[#allocation2 + $0xd0] sm:$0xff]
    %v56 = vld [vmem:[#allocation2 + $0xd8] sm:$0xff]
    %v57 = vld [vmem:[#allocation2 + $0xe0] sm:$0xff]
    %v58 = vld [vmem:[#allocation2 + $0xe8] sm:$0xff]
    %v59 = vld [vmem:[#allocation2 + $0xf0] sm:$0xff]
    %v60 = vld [vmem:[#allocation2 + $0xf8] sm:$0xff]
    %v61 = vadd.f32 %v29, %v30
    %v62 = vadd.f32 %v61, %v31
    %v63 = vadd.f32 %v62, %v32
    %v64 = vadd.f32 %v63, %v33
    %v65 = vadd.f32 %v64, %v34
    %v66 = vadd.f32 %v65, %v35
    %v67 = vadd.f32 %v66, %v36
    %68 = vadd.xlane.f32.xlu0 %v67
    %v69 = vpop.xlane.xlu0 %68
    %v70 = vadd.f32 %v37, %v38
    %v71 = vadd.f32 %v70, %v39
    %v72 = vadd.f32 %v71, %v40
    %v73 = vadd.f32 %v72, %v41
    %v74 = vadd.f32 %v73, %v42
    %v75 = vadd.f32 %v74, %v43
    %v76 = vadd.f32 %v75, %v44
    %77 = vadd.xlane.f32.xlu0 %v76
    %v78 = vpop.xlane.xlu0 %77
    %v79 = vadd.f32 %v45, %v46
    %v80 = vadd.f32 %v79, %v47
    %v81 = vadd.f32 %v80, %v48
    %v82 = vadd.f32 %v81, %v49
    %v83 = vadd.f32 %v82, %v50
    %v84 = vadd.f32 %v83, %v51
    %v85 = vadd.f32 %v84, %v52
    %86 = vadd.xlane.f32.xlu0 %v85
    %v87 = vpop.xlane.xlu0 %86
    %v88 = vadd.f32 %v53, %v54
    %v89 = vadd.f32 %v88, %v55
    %v90 = vadd.f32 %v89, %v56
    %v91 = vadd.f32 %v90, %v57
    %v92 = vadd.f32 %v91, %v58
    %v93 = vadd.f32 %v92, %v59
    %v94 = vadd.f32 %v93, %v60
    %95 = vadd.xlane.f32.xlu0 %v94
    %v96 = vpop.xlane.xlu0 %95
    %v97 = vmul.f32 %v69, 0.0009765625
    %v98 = vmul.f32 %v78, 0.0009765625
    %v99 = vmul.f32 %v87, 0.0009765625
    %v100 = vmul.f32 %v96, 0.0009765625
    %v101 = vld [vmem:[%s1] sm:$0xff]
    %v102 = vld [vmem:[%s1 + $0x8] sm:$0xff]
    %v103 = vld [vmem:[%s2] sm:$0xf]
    %v108 = vlaneseq
    %v109 = vand.u32 %v108, 127
    %v110 = vlaneseq
    %v111 = vshrl.u32 %v110, 7
    %v112 = vsub.s32 %v109, %v111
    %v113 = vrot.slane %v97, %v112
    %v114 = vadd.s32 %v109, 4294967288
    %v115 = vlaneseq
    %v116 = vshrl.u32 %v115, 7
    %v117 = vsub.s32 %v114, %v116
    %v118 = vrot.slane %v98, %v117
    %vm119 = vcmask 130112
    %v120 = vsel %vm119, %v118, %v113
    %v121 = vlaneseq
    %v122 = vshrl.u32 %v121, 7
    %v123 = vsub.s32 %v109, %v122
    %v124 = vrot.slane %v99, %v123
    %v125 = vlaneseq
    %v126 = vshrl.u32 %v125, 7
    %v127 = vsub.s32 %v114, %v126
    %v128 = vrot.slane %v100, %v127
    %v129 = vsel %vm119, %v128, %v124
    %vm130 = vcmask 1041409
    %v131 = vsel %vm130, %v129, %v120
    %vm132 = vcmask 130048
    %v133 = vsel %vm132, %v131, 0
    %135 = vmatprep.subr.mxu0 0.0
    %136 = vmatpush1.msra.mxu0 %v101
    %137 = vmatprep.subr.mxu0 0.0
    %138 = vmatpush1.msra.mxu0 %v102
    %139 = vmatprep.subr.mxu0 0.0
    %140 = vmatpush1.msra.mxu0 0.0
    %141 = vmatprep.subr.mxu0 0.0
    %142 = vmatpush1.msra.mxu0 0.0
    %143 = vmatprep.subr.mxu0 0.0
    %144 = vmatpush1.msra.mxu0 0.0
    %145 = vmatprep.subr.mxu0 0.0
    %146 = vmatpush1.msra.mxu0 0.0
    %147 = vmatprep.subr.mxu0 0.0
    %148 = vmatpush1.msra.mxu0 0.0
    %149 = vmatprep.subr.mxu0 0.0
    %150 = vmatpush1.msra.mxu0 0.0
    %151 = vmatprep.subr.mxu0 0.0
    %152 = vmatpush1.msra.mxu0 0.0
    %153 = vmatprep.subr.mxu0 0.0
    %154 = vmatpush1.msra.mxu0 0.0
    %155 = vmatprep.subr.mxu0 0.0
    %156 = vmatpush1.msra.mxu0 0.0
    %157 = vmatprep.subr.mxu0 0.0
    %158 = vmatpush1.msra.mxu0 0.0
    %159 = vmatprep.subr.mxu0 0.0
    %160 = vmatpush1.msra.mxu0 0.0
    %161 = vmatprep.subr.mxu0 0.0
    %162 = vmatpush1.msra.mxu0 0.0
    %163 = vmatprep.subr.mxu0 0.0
    %164 = vmatpush1.msra.mxu0 0.0
    %165 = vmatprep.subr.mxu0 0.0
    %166 = vmatpush1.msra.mxu0 0.0
    %167 = vmatprep.subr.mxu0 0.0
    %168 = vmatpush1.msra.mxu0 0.0
    %169 = vmatprep.subr.mxu0 0.0
    %170 = vmatpush1.msra.mxu0 0.0
    %171 = vmatprep.subr.mxu0 0.0
    %172 = vmatpush1.msra.mxu0 0.0
    %173 = vmatprep.subr.mxu0 0.0
    %174 = vmatpush1.msra.mxu0 0.0
    %175 = vmatprep.subr.mxu0 0.0
    %176 = vmatpush1.msra.mxu0 0.0
    %177 = vmatprep.subr.mxu0 0.0
    %178 = vmatpush1.msra.mxu0 0.0
    %179 = vmatprep.subr.mxu0 0.0
    %180 = vmatpush1.msra.mxu0 0.0
    %181 = vmatprep.subr.mxu0 0.0
    %182 = vmatpush1.msra.mxu0 0.0
    %183 = vmatprep.subr.mxu0 0.0
    %184 = vmatpush1.msra.mxu0 0.0
    %185 = vmatprep.subr.mxu0 0.0
    %186 = vmatpush1.msra.mxu0 0.0
    %187 = vmatprep.subr.mxu0 0.0
    %188 = vmatpush1.msra.mxu0 0.0
    %189 = vmatprep.subr.mxu0 0.0
    %190 = vmatpush1.msra.mxu0 0.0
    %191 = vmatprep.subr.mxu0 0.0
    %192 = vmatpush1.msra.mxu0 0.0
    %193 = vmatprep.subr.mxu0 0.0
    %194 = vmatpush1.msra.mxu0 0.0
    %195 = vmatprep.subr.mxu0 0.0
    %196 = vmatpush1.msra.mxu0 0.0
    %197 = vmatprep.subr.mxu0 0.0
    %198 = vmatpush1.msra.mxu0 0.0
    %199 = vmatprep.mubr.f32.mxu0 0.0
    %200 = vmatmul.mubr.f32.gmra.mrb[0].mxu0 %v133
    %v201 = vpop.f32.mrb[0].mxu0
    %v202 = vadd.f32 0.0, %v201
    %v203 = vpop.f32.mrb[0].mxu0
    %204 = vdwg.mxu0
    %v205 = vxor.u32 %v202, 2147483648
    %v206 = vmul.f32 %v205, 1.442695
    %v207 = vpow.pop %v206
    %v208 = vadd.f32 %v207, 1.0
    %v209 = vrcp.pop %v208
    %v210 = vmul.f32 1.0, %v209
    %v211 = vmul.f32 %v202, %v210
    %vm212 = vcmask 31744
    %v214 = vsel %vm212, %v211, 0
    %vm216 = vcmask 1043456
    %v218 = vsel %vm216, %v103, 0
    %220 = vmatprep.subr.mxu0 0.0
    %221 = vmatpush1.msra.mxu0 %v218
    %222 = vmatprep.subr.mxu0 0.0
    %223 = vmatpush1.msra.mxu0 0.0
    %224 = vmatprep.subr.mxu0 0.0
    %225 = vmatpush1.msra.mxu0 0.0
    %226 = vmatprep.subr.mxu0 0.0
    %227 = vmatpush1.msra.mxu0 0.0
    %228 = vmatprep.subr.mxu0 0.0
    %229 = vmatpush1.msra.mxu0 0.0
    %230 = vmatprep.subr.mxu0 0.0
    %231 = vmatpush1.msra.mxu0 0.0
    %232 = vmatprep.subr.mxu0 0.0
    %233 = vmatpush1.msra.mxu0 0.0
    %234 = vmatprep.subr.mxu0 0.0
    %235 = vmatpush1.msra.mxu0 0.0
    %236 = vmatprep.subr.mxu0 0.0
    %237 = vmatpush1.msra.mxu0 0.0
    %238 = vmatprep.subr.mxu0 0.0
    %239 = vmatpush1.msra.mxu0 0.0
    %240 = vmatprep.subr.mxu0 0.0
    %241 = vmatpush1.msra.mxu0 0.0
    %242 = vmatprep.subr.mxu0 0.0
    %243 = vmatpush1.msra.mxu0 0.0
    %244 = vmatprep.subr.mxu0 0.0
    %245 = vmatpush1.msra.mxu0 0.0
    %246 = vmatprep.subr.mxu0 0.0
    %247 = vmatpush1.msra.mxu0 0.0
    %248 = vmatprep.subr.mxu0 0.0
    %249 = vmatpush1.msra.mxu0 0.0
    %250 = vmatprep.subr.mxu0 0.0
    %251 = vmatpush1.msra.mxu0 0.0
    %252 = vmatprep.subr.mxu0 0.0
    %253 = vmatpush1.msra.mxu0 0.0
    %254 = vmatprep.subr.mxu0 0.0
    %255 = vmatpush1.msra.mxu0 0.0
    %256 = vmatprep.subr.mxu0 0.0
    %257 = vmatpush1.msra.mxu0 0.0
    %258 = vmatprep.subr.mxu0 0.0
    %259 = vmatpush1.msra.mxu0 0.0
    %260 = vmatprep.subr.mxu0 0.0
    %261 = vmatpush1.msra.mxu0 0.0
    %262 = vmatprep.subr.mxu0 0.0
    %263 = vmatpush1.msra.mxu0 0.0
    %264 = vmatprep.subr.mxu0 0.0
    %265 = vmatpush1.msra.mxu0 0.0
    %266 = vmatprep.subr.mxu0 0.0
    %267 = vmatpush1.msra.mxu0 0.0
    %268 = vmatprep.subr.mxu0 0.0
    %269 = vmatpush1.msra.mxu0 0.0
    %270 = vmatprep.subr.mxu0 0.0
    %271 = vmatpush1.msra.mxu0 0.0
    %272 = vmatprep.subr.mxu0 0.0
    %273 = vmatpush1.msra.mxu0 0.0
    %274 = vmatprep.subr.mxu0 0.0
    %275 = vmatpush1.msra.mxu0 0.0
    %276 = vmatprep.subr.mxu0 0.0
    %277 = vmatpush1.msra.mxu0 0.0
    %278 = vmatprep.subr.mxu0 0.0
    %279 = vmatpush1.msra.mxu0 0.0
    %280 = vmatprep.subr.mxu0 0.0
    %281 = vmatpush1.msra.mxu0 0.0
    %282 = vmatprep.subr.mxu0 0.0
    %283 = vmatpush1.msra.mxu0 0.0
    %284 = vmatprep.mubr.f32.mxu0 0.0
    %285 = vmatmul.mubr.f32.gmra.mrb[0].mxu0 %v214
    %v286 = vpop.f32.mrb[0].mxu0
    %v287 = vadd.f32 0.0, %v286
    %v288 = vpop.f32.mrb[0].mxu0
    %289 = vdwg.mxu0
    %v290 = vxor.u32 %v287, 2147483648
    %v291 = vmul.f32 %v290, 1.442695
    %v292 = vpow.pop %v291
    %v293 = vadd.f32 %v292, 1.0
    %v294 = vrcp.pop %v293
    %v295 = vmul.f32 1.0, %v294
    %v296 = vlaneseq
    %v297 = vshrl.u32 %v296, 7
    %v298 = vsub.s32 0, %v297
    %v299 = vrot.slane %v295, %v298
    %301 = vbcast.lane.b32.xlu0 %v299, 256
    %v302 = vpop.permute.xlu0 %301
    %s304 = sor.u32 256, 8
    %305 = vbcast.lane.b32.xlu0 %v299, %s304
    %v306 = vpop.permute.xlu0 %305
    %v307 = vlaneseq
    %v308 = vshrl.u32 %v307, 7
    %v309 = vsub.s32 1, %v308
    %v310 = vrot.slane %v295, %v309
    %312 = vbcast.lane.b32.xlu0 %v310, 256
    %v313 = vpop.permute.xlu0 %312
    %s315 = sor.u32 256, 8
    %316 = vbcast.lane.b32.xlu0 %v310, %s315
    %v317 = vpop.permute.xlu0 %316
    %v318 = vadd.f32 %v29, %v302
    %v319 = vadd.f32 %v30, %v302
    %v320 = vadd.f32 %v31, %v302
    %v321 = vadd.f32 %v32, %v302
    %v322 = vadd.f32 %v33, %v302
    %v323 = vadd.f32 %v34, %v302
    %v324 = vadd.f32 %v35, %v302
    %v325 = vadd.f32 %v36, %v302
    %v326 = vadd.f32 %v37, %v306
    %v327 = vadd.f32 %v38, %v306
    %v328 = vadd.f32 %v39, %v306
    %v329 = vadd.f32 %v40, %v306
    %v330 = vadd.f32 %v41, %v306
    %v331 = vadd.f32 %v42, %v306
    %v332 = vadd.f32 %v43, %v306
    %v333 = vadd.f32 %v44, %v306
    %v334 = vadd.f32 %v45, %v313
    %v335 = vadd.f32 %v46, %v313
    %v336 = vadd.f32 %v47, %v313
    %v337 = vadd.f32 %v48, %v313
    %v338 = vadd.f32 %v49, %v313
    %v339 = vadd.f32 %v50, %v313
    %v340 = vadd.f32 %v51, %v313
    %v341 = vadd.f32 %v52, %v313
    %v342 = vadd.f32 %v53, %v317
    %v343 = vadd.f32 %v54, %v317
    %v344 = vadd.f32 %v55, %v317
    %v345 = vadd.f32 %v56, %v317
    %v346 = vadd.f32 %v57, %v317
    %v347 = vadd.f32 %v58, %v317
    %v348 = vadd.f32 %v59, %v317
    %v349 = vadd.f32 %v60, %v317
    %350 = vst [vmem:[#allocation5] sm:$0xff] %v318
    %351 = vst [vmem:[#allocation5 + $0x8] sm:$0xff] %v319
    %352 = vst [vmem:[#allocation5 + $0x10] sm:$0xff] %v320
    %353 = vst [vmem:[#allocation5 + $0x18] sm:$0xff] %v321
    %354 = vst [vmem:[#allocation5 + $0x20] sm:$0xff] %v322
    %355 = vst [vmem:[#allocation5 + $0x28] sm:$0xff] %v323
    %356 = vst [vmem:[#allocation5 + $0x30] sm:$0xff] %v324
    %357 = vst [vmem:[#allocation5 + $0x38] sm:$0xff] %v325
    %358 = vst [vmem:[#allocation5 + $0x40] sm:$0xff] %v326
    %359 = vst [vmem:[#allocation5 + $0x48] sm:$0xff] %v327
    %360 = vst [vmem:[#allocation5 + $0x50] sm:$0xff] %v328
    %361 = vst [vmem:[#allocation5 + $0x58] sm:$0xff] %v329
    %362 = vst [vmem:[#allocation5 + $0x60] sm:$0xff] %v330
    %363 = vst [vmem:[#allocation5 + $0x68] sm:$0xff] %v331
    %364 = vst [vmem:[#allocation5 + $0x70] sm:$0xff] %v332
    %365 = vst [vmem:[#allocation5 + $0x78] sm:$0xff] %v333
    %366 = vst [vmem:[#allocation5 + $0x80] sm:$0xff] %v334
    %367 = vst [vmem:[#allocation5 + $0x88] sm:$0xff] %v335
    %368 = vst [vmem:[#allocation5 + $0x90] sm:$0xff] %v336
    %369 = vst [vmem:[#allocation5 + $0x98] sm:$0xff] %v337
    %370 = vst [vmem:[#allocation5 + $0xa0] sm:$0xff] %v338
    %371 = vst [vmem:[#allocation5 + $0xa8] sm:$0xff] %v339
    %372 = vst [vmem:[#allocation5 + $0xb0] sm:$0xff] %v340
    %373 = vst [vmem:[#allocation5 + $0xb8] sm:$0xff] %v341
    %374 = vst [vmem:[#allocation5 + $0xc0] sm:$0xff] %v342
    %375 = vst [vmem:[#allocation5 + $0xc8] sm:$0xff] %v343
    %376 = vst [vmem:[#allocation5 + $0xd0] sm:$0xff] %v344
    %377 = vst [vmem:[#allocation5 + $0xd8] sm:$0xff] %v345
    %378 = vst [vmem:[#allocation5 + $0xe0] sm:$0xff] %v346
    %379 = vst [vmem:[#allocation5 + $0xe8] sm:$0xff] %v347
    %380 = vst [vmem:[#allocation5 + $0xf0] sm:$0xff] %v348
    %381 = vst [vmem:[#allocation5 + $0xf8] sm:$0xff] %v349
    // Predicated region
    $region18: #{tpu_custom_call.1} parent=1 // pred_check
      _
    $region19: #{tpu_custom_call.1} parent=1 // pred_check_branch
      %383 = sbr.rel (0) target = $region21
    $region20: #{tpu_custom_call.1} parent=1 // pred_region
      %s385 = ssub.s32 4096, 4096
      %386 = vsyncadd [#allocation4], %s385
      %s387 = sshll.u32 [#allocation5], 4
      %s388 = int_to_ptr.vmem [resolvable:$true] %s387
      %393 = dma.vmem_to_hbm [thread:$0]  %s388, 4096, %s3, [#allocation4], 1024, 1024, 64
    $region21: #{tpu_custom_call.1} parent=1 // pred_fallthru
      _
    // Predicated region
    $region22: #{tpu_custom_call.1} parent=1 // pred_check
      _
    $region23: #{tpu_custom_call.1} parent=1 // pred_check_branch
      %395 = sbr.rel (0) target = $region25
    $region24: #{tpu_custom_call.1} parent=1 // pred_region
      %396 = dma.done [#allocation4], 4096
    $region25: #{tpu_custom_call.1} parent=1 // pred_fallthru
      _
    %397 = vsyncpa [#allocation3], 1
    %398 = vsyncpa [#allocation4], 1

</llo_original>
